<compile_context>
chip_gen: v7x
topology: tpu7x:2x2x1
jax: 0.10.0
libtpu: 0.0.40
codegen_flags: <defaults>
</compile_context>

<pallas_src>
import jax
import jax.numpy as jnp
from jax.experimental import pallas as pl
from jax.experimental.pallas import tpu as pltpu

EPS = 1e-5
LANE = 128
SUBLANE = 8


def _round_up(a, b):
    return ((a + b - 1) // b) * b


def _tpu_vmem_capacity_bytes():
    try:
        info = pltpu.get_tpu_info()
        for attr in ("vmem_capacity_bytes", "vmem_bytes", "vmem_capacity"):
            v = getattr(info, attr, None)
            if isinstance(v, int) and v > 0:
                return v
    except Exception:
        pass
    return 64 * 1024 * 1024  # conservative (v7x per-core VMEM)


# ----------------------------------------------------------------------------
# In-kernel helpers (BN folded into scale/shift; train-mode bias cancels)
# ----------------------------------------------------------------------------
def _accumulate_stats(acc_ref, h, i, tile, n_rows, hk, fuse):
    # Masked ones-row: the batch-axis reduce rides the MXU; padded rows excluded.
    col = jax.lax.broadcasted_iota(jnp.int32, (1, tile), 1) + i * tile
    ones = (col < n_rows).astype(jnp.float32)
    if fuse:
        acc_ref[...] += jnp.dot(ones, jnp.concatenate([h, h * h], axis=-1),
                                preferred_element_type=jnp.float32)
    else:
        acc_ref[:, :hk] += jnp.dot(ones, h, preferred_element_type=jnp.float32)
        acc_ref[:, hk:] += jnp.dot(ones, h * h, preferred_element_type=jnp.float32)


def _finalize_stats(acc_ref, gb_ref, sc_out_ref, n_rows, hk):
    inv_n = jnp.float32(1.0 / n_rows)
    m0 = acc_ref[:, :hk] * inv_n                                   # mean (bias-free)
    var = jnp.maximum(acc_ref[:, hk:] * inv_n - m0 * m0, 0.0)      # clamp >= 0
    scale = gb_ref[0:1, :] * jax.lax.rsqrt(var + EPS)
    sc_out_ref[0:1, :] = scale
    sc_out_ref[1:2, :] = gb_ref[1:2, :] - m0 * scale


def _make_stats_first_kernel(n_rows, tile, hk, cdt, fuse):
    """Stats for hidden layer 1: reads x, emits sc_1 = [scale; shift]."""
    def kernel(x_ref, w1_ref, gb_ref, sc_out_ref, acc_ref):
        i = pl.program_id(0)

        @pl.when(i == 0)
        def _():
            acc_ref[...] = jnp.zeros_like(acc_ref)

        h = jnp.dot(x_ref[...].astype(cdt), w1_ref[...],
                    preferred_element_type=jnp.float32)
        _accumulate_stats(acc_ref, h, i, tile, n_rows, hk, fuse)

        @pl.when(i == pl.num_programs(0) - 1)
        def _():
            _finalize_stats(acc_ref, gb_ref, sc_out_ref, n_rows, hk)
    return kernel


def _make_stats_apply_kernel(n_rows, tile, hk, cdt, fuse):
    """Stats for hidden layer k>=2: applies layer k-1 (folded BN + ReLU),
    forwards a_{k-1} to HBM, and accumulates stats for layer k."""
    def kernel(a_prev_ref, w_prev_ref, sc_prev_ref, wk_ref, gb_ref,
               a_out_ref, sc_out_ref, acc_ref):
        i = pl.program_id(0)

        @pl.when(i == 0)
        def _():
            acc_ref[...] = jnp.zeros_like(acc_ref)

        pre = jnp.dot(a_prev_ref[...].astype(cdt), w_prev_ref[...],
                      preferred_element_type=jnp.float32)
        a = jnp.maximum(pre * sc_prev_ref[0:1, :] + sc_prev_ref[1:2, :], 0.0)
        a_out_ref[...] = a.astype(a_out_ref.dtype)

        h = jnp.dot(a.astype(cdt), wk_ref[...], preferred_element_type=jnp.float32)
        _accumulate_stats(acc_ref, h, i, tile, n_rows, hk, fuse)

        @pl.when(i == pl.num_programs(0) - 1)
        def _():
            _finalize_stats(acc_ref, gb_ref, sc_out_ref, n_rows, hk)
    return kernel


def _make_final_kernel(cdt):
    """Apply last hidden layer (folded BN + ReLU), then output Linear + ReLU."""
    def kernel(a_ref, wl_ref, scl_ref, w_out_ref, b_out_ref, o_ref):
        pre = jnp.dot(a_ref[...].astype(cdt), wl_ref[...],
                      preferred_element_type=jnp.float32)
        a = jnp.maximum(pre * scl_ref[0:1, :] + scl_ref[1:2, :], 0.0)
        h = jnp.dot(a.astype(cdt), w_out_ref[...],
                    preferred_element_type=jnp.float32) + b_out_ref[...]
        o_ref[...] = jnp.maximum(h, 0.0).astype(o_ref.dtype)
    return kernel


def _make_fused_kernel(n_rows, n_hidden, cdt):
    """Single-launch path: whole batch resident in VMEM, BN stats on-chip."""
    def kernel(*refs):
        x_ref = refs[0]
        o_ref = refs[3 + 2 * n_hidden]
        npad = x_ref.shape[0]
        row = jax.lax.broadcasted_iota(jnp.int32, (npad, 1), 0)
        valid = (row < n_rows).astype(jnp.float32)
        inv_n = jnp.float32(1.0 / n_rows)

        a = x_ref[...]
        for k in range(n_hidden):
            w_ref, gb_ref = refs[1 + 2 * k], refs[2 + 2 * k]
            h = jnp.dot(a.astype(cdt), w_ref[...],
                        preferred_element_type=jnp.float32)
            hm = h * valid                       # mask padded rows out of the stats
            mean = jnp.sum(hm, axis=0, keepdims=True) * inv_n
            var = jnp.maximum(jnp.sum(hm * h, axis=0, keepdims=True) * inv_n
                              - mean * mean, 0.0)
            scale = gb_ref[0:1, :] * jax.lax.rsqrt(var + EPS)
            shift = gb_ref[1:2, :] - mean * scale
            a = jnp.maximum(h * scale + shift, 0.0)

        w_out_ref, b_out_ref = refs[1 + 2 * n_hidden], refs[2 + 2 * n_hidden]
        h = jnp.dot(a.astype(cdt), w_out_ref[...],
                    preferred_element_type=jnp.float32) + b_out_ref[...]
        o_ref[...] = jnp.maximum(h, 0.0).astype(o_ref.dtype)
    return kernel


# ----------------------------------------------------------------------------
# Host-side packing / wrapper
# ----------------------------------------------------------------------------
def prepare_params(params, n_hidden, compute_dtype=jnp.bfloat16, hidden_pad=LANE):
    """One-time packing (no per-call transposes).

    * Linear weights transposed to (in, out), cast to the MXU compute dtype.
    * Hidden widths zero-padded to multiples of `hidden_pad` lanes (padded
      features get gamma=beta=0, and zero rows in the next weight, so they stay
      exactly 0 through folded BN + ReLU).  Use 256 on v6e/v7x if desired.
    * (gamma, beta) packed into one (2, H) f32 array; Linear biases feeding a
      BatchNorm are dropped — they cancel exactly in train-mode BN.
    * Output weight/bias padded to a lane-dense (multiple of 128) width.
    """
    prep = {"n_hidden": n_hidden, "compute_dtype": compute_dtype}
    prev_true = params["w1"].shape[1]          # ninput
    prev_pad = prev_true                       # input feature dim not padded
    for k in range(1, n_hidden + 1):
        w = jnp.asarray(params[f"w{k}"], jnp.float32)      # (H_k, prev) torch layout
        hk_true = w.shape[0]
        hk_pad = _round_up(hk_true, hidden_pad)
        w_t = jnp.zeros((prev_pad, hk_pad), jnp.float32)
        w_t = w_t.at[:prev_true, :hk_true].set(w.T)
        prep[f"w{k}"] = w_t.astype(compute_dtype)
        gb = jnp.zeros((2, hk_pad), jnp.float32)
        gb = gb.at[0, :hk_true].set(params[f"g{k}"].astype(jnp.float32))
        gb = gb.at[1, :hk_true].set(params[f"be{k}"].astype(jnp.float32))
        prep[f"gb{k}"] = gb
        prev_true, prev_pad = hk_true, hk_pad

    k = n_hidden + 1
    w_out = jnp.asarray(params[f"w{k}"], jnp.float32)      # (noutput, H_L)
    noutput = w_out.shape[0]
    out_pad = _round_up(noutput, LANE)
    w_o = jnp.zeros((prev_pad, out_pad), jnp.float32)
    w_o = w_o.at[:prev_true, :noutput].set(w_out.T)
    prep["w_out"] = w_o.astype(compute_dtype)
    b_o = jnp.zeros((1, out_pad), jnp.float32)
    b_o = b_o.at[:, :noutput].set(params[f"b{k}"].astype(jnp.float32))
    prep["b_out"] = b_o
    prep["noutput"] = noutput
    return prep


def mlp_g_forward(x, prep, *, tile_rows=None, out_dtype=jnp.float32,
                  force_multipass=False):
    n, f = x.shape
    n_hidden = prep["n_hidden"]
    cdt = prep["compute_dtype"]
    noutput = prep["noutput"]
    out_pad = prep["b_out"].shape[1]
    hidden_widths = [prep[f"w{k}"].shape[1] for k in range(1, n_hidden + 1)]

    # --- generation-dependent budgets (v5e/v6e: 128 MiB VMEM, v7x: 64 MiB) ---
    big_vmem = _tpu_vmem_capacity_bytes() >= 96 * (1 << 20)
    vmem_limit = (64 if big_vmem else 32) * (1 << 20)
    if tile_rows is None:
        if big_vmem:
            tile_rows = 1024
        else:
            tile_rows = 256 if max(hidden_widths) >= 1024 else 512

    n8 = _round_up(max(n, SUBLANE), SUBLANE)
    array_keys = ([f"w{k}" for k in range(1, n_hidden + 1)]
                  + [f"gb{k}" for k in range(1, n_hidden + 1)]
                  + ["w_out", "b_out"])
    param_bytes = sum(int(prep[k].size) * prep[k].dtype.itemsize for k in array_keys)

    # --- fast path: whole batch + all weights resident -> ONE kernel launch ---
    fast_act_bytes = n8 * (f + sum(hidden_widths) + out_pad) * 4
    fast_budget = (8 if big_vmem else 4) * (1 << 20)
    if (not force_multipass) and (fast_act_bytes + param_bytes <= fast_budget):
        xp = jnp.pad(x, ((0, n8 - n), (0, 0))).astype(cdt)
        args = [xp]
        specs = [pl.BlockSpec((n8, f), lambda i: (0, 0))]
        for k in range(1, n_hidden + 1):
            for arr in (prep[f"w{k}"], prep[f"gb{k}"]):
                args.append(arr)
                specs.append(pl.BlockSpec(arr.shape, lambda i: (0, 0)))
        for arr in (prep["w_out"], prep["b_out"]):
            args.append(arr)
            specs.append(pl.BlockSpec(arr.shape, lambda i: (0, 0)))
        out = pl.pallas_call(
            _make_fused_kernel(n, n_hidden, cdt),
            out_shape=jax.ShapeDtypeStruct((n8, out_pad), out_dtype),
            grid_spec=pltpu.PrefetchScalarGridSpec(
                num_scalar_prefetch=0, grid=(1,),
                in_specs=specs,
                out_specs=pl.BlockSpec((n8, out_pad), lambda i: (0, 0))),
            compiler_params=pltpu.CompilerParams(
                dimension_semantics=("arbitrary",),
                vmem_limit_bytes=vmem_limit),
        )(*args)
        return out[:n, :noutput]

    # --- multi-pass path: batch-tiled, activation forwarding (no recompute) ---
    num_tiles = -(-n8 // tile_rows)
    tile = _round_up(-(-n8 // num_tiles), SUBLANE)    # balanced tiles, pad <= 8*tiles
    n_pad = tile * num_tiles
    xp = jnp.pad(x, ((0, n_pad - n), (0, 0))).astype(cdt)   # cast once in the wrapper

    comp_arb = pltpu.CompilerParams(dimension_semantics=("arbitrary",),
                                    vmem_limit_bytes=vmem_limit)
    comp_par = pltpu.CompilerParams(dimension_semantics=("parallel",),
                                    vmem_limit_bytes=vmem_limit)

    def tiled_spec(width):
        return pl.BlockSpec((tile, width), lambda i: (i, 0))

    def const_spec(arr):
        # Whole (small) array, same block every step -> resident in VMEM.
        return pl.BlockSpec(arr.shape, lambda i: (0,) * arr.ndim)

    a_prev = xp              # activation entering layer k (HBM array)
    sc_prev = None
    for k in range(1, n_hidden + 1):
        wk, gbk = prep[f"w{k}"], prep[f"gb{k}"]
        hk = wk.shape[1]
        fuse = tile * (2 * hk) * 4 <= 2 * (1 << 20)   # fuse sum/sumsq reduce matmuls
        scratch = [pltpu.VMEM((1, 2 * hk), jnp.float32)]
        sc_shape = jax.ShapeDtypeStruct((2, hk), jnp.float32)
        sc_spec = pl.BlockSpec((2, hk), lambda i: (0, 0))
        if k == 1:
            sc = pl.pallas_call(
                _make_stats_first_kernel(n, tile, hk, cdt, fuse),
                out_shape=sc_shape,
                grid_spec=pltpu.PrefetchScalarGridSpec(
                    num_scalar_prefetch=0, grid=(num_tiles,),
                    in_specs=[tiled_spec(a_prev.shape[1]), const_spec(wk),
                              const_spec(gbk)],
                    out_specs=sc_spec,
                    scratch_shapes=scratch),
                compiler_params=comp_arb,
            )(a_prev, wk, gbk)
        else:
            w_prev = prep[f"w{k - 1}"]
            h_prev = w_prev.shape[1]
            a_prev, sc = pl.pallas_call(
                _make_stats_apply_kernel(n, tile, hk, cdt, fuse),
                out_shape=(jax.ShapeDtypeStruct((n_pad, h_prev), cdt), sc_shape),
                grid_spec=pltpu.PrefetchScalarGridSpec(
                    num_scalar_prefetch=0, grid=(num_tiles,),
                    in_specs=[tiled_spec(a_prev.shape[1]), const_spec(w_prev),
                              const_spec(sc_prev), const_spec(wk), const_spec(gbk)],
                    out_specs=[pl.BlockSpec((tile, h_prev), lambda i: (i, 0)),
                               sc_spec],
                    scratch_shapes=scratch),
                compiler_params=comp_arb,
            )(a_prev, w_prev, sc_prev, wk, gbk)
        sc_prev = sc

    wl = prep[f"w{n_hidden}"]
    out = pl.pallas_call(
        _make_final_kernel(cdt),
        out_shape=jax.ShapeDtypeStruct((n_pad, out_pad), out_dtype),
        grid_spec=pltpu.PrefetchScalarGridSpec(
            num_scalar_prefetch=0, grid=(num_tiles,),
            in_specs=[tiled_spec(a_prev.shape[1]), const_spec(wl),
                      const_spec(sc_prev), const_spec(prep["w_out"]),
                      const_spec(prep["b_out"])],
            out_specs=pl.BlockSpec((tile, out_pad), lambda i: (i, 0))),
        compiler_params=comp_par,
    )(a_prev, wl, sc_prev, prep["w_out"], prep["b_out"])
    return out[:n, :noutput]


# ----------------------------------------------------------------------------
# Init (mirrors MLP_G.init_weights) and pure-JAX reference
# ----------------------------------------------------------------------------
def init_params(key, ninput, hidden_sizes, noutput, init_std=0.02):
    sizes = [ninput] + list(hidden_sizes)
    keys = jax.random.split(key, 2 * len(hidden_sizes) + 1)
    params = {}
    ki = 0
    for i in range(len(hidden_sizes)):
        fan_in, fan_out = sizes[i], sizes[i + 1]
        params[f"w{i+1}"] = init_std * jax.random.normal(keys[ki], (fan_out, fan_in),
                                                         jnp.float32)
        params[f"b{i+1}"] = jnp.zeros((fan_out,), jnp.float32)
        ki += 1
        params[f"g{i+1}"] = init_std * jax.random.normal(keys[ki], (fan_out,),
                                                         jnp.float32)
        params[f"be{i+1}"] = jnp.zeros((fan_out,), jnp.float32)
        ki += 1
    last = len(hidden_sizes) + 1
    params[f"w{last}"] = init_std * jax.random.normal(keys[ki], (noutput, sizes[-1]),
                                                      jnp.float32)
    params[f"b{last}"] = jnp.zeros((noutput,), jnp.float32)
    return params


def mlp_g_reference(x, params, n_hidden):
    h = x
    for k in range(1, n_hidden + 1):
        h = h @ params[f"w{k}"].T + params[f"b{k}"][None, :]
        mean = jnp.mean(h, axis=0, keepdims=True)
        var = jnp.mean((h - mean) ** 2, axis=0, keepdims=True)
        h = (h - mean) / jnp.sqrt(var + EPS) * params[f"g{k}"][None, :] \
            + params[f"be{k}"][None, :]
        h = jnp.maximum(h, 0.0)
    k = n_hidden + 1
    h = h @ params[f"w{k}"].T + params[f"b{k}"][None, :]
    return jnp.maximum(h, 0.0)


if __name__ == "__main__":
    key = jax.random.PRNGKey(0)
    kx, kp, kx2, kp2, kb = jax.random.split(key, 5)

    # ---- case 1: MLP_G(16, 16, "32-32"), batch=8 -> single fused kernel ----
    batch, ninput, noutput = 8, 16, 16
    hidden = (32, 32)
    n_hidden = len(hidden)
    x = jax.random.normal(kx, (batch, ninput), jnp.float32)
    params = init_params(kp, ninput, hidden, noutput)
    ref = mlp_g_reference(x, params, n_hidden)

    prep_f32 = prepare_params(params, n_hidden, compute_dtype=jnp.float32)
    out_f32 = jax.block_until_ready(mlp_g_forward(x, prep_f32))
    assert out_f32.shape == (batch, noutput)
    assert jnp.allclose(out_f32, ref, atol=1e-4, rtol=1e-4), "case1 f32 mismatch"

    prep_bf16 = prepare_params(params, n_hidden, compute_dtype=jnp.bfloat16)
    out_bf16 = jax.block_until_ready(mlp_g_forward(x, prep_bf16))
    assert out_bf16.shape == (batch, noutput)
    assert jnp.allclose(out_bf16, ref, atol=5e-2, rtol=5e-2), "case1 bf16 mismatch"

    # ---- case 2: forced multi-pass path (batch-tiled, activation forwarding,
    #      ragged balanced tiles, masked BN stats, nonzero biases/betas) ----
    batch2, ninput2, noutput2 = 530, 16, 10
    hidden2 = (32, 64)
    n_hidden2 = len(hidden2)
    x2 = jax.random.normal(kx2, (batch2, ninput2), jnp.float32)
    params2 = init_params(kp2, ninput2, hidden2, noutput2)
    # Nonzero Linear biases / BN betas to exercise the exact bias cancellation.
    for name in ("b1", "b2", "b3", "be1", "be2"):
        kb, sub = jax.random.split(kb)
        params2[name] = 0.1 * jax.random.normal(sub, params2[name].shape, jnp.float32)
    ref2 = mlp_g_reference(x2, params2, n_hidden2)

    prep2_f32 = prepare_params(params2, n_hidden2, compute_dtype=jnp.float32)
    out2_f32 = jax.block_until_ready(
        mlp_g_forward(x2, prep2_f32, tile_rows=256, force_multipass=True))
    assert out2_f32.shape == (batch2, noutput2)
    assert jnp.allclose(out2_f32, ref2, atol=1e-4, rtol=1e-4), "case2 f32 mismatch"

    prep2_bf16 = prepare_params(params2, n_hidden2, compute_dtype=jnp.bfloat16)
    out2_bf16 = jax.block_until_ready(
        mlp_g_forward(x2, prep2_bf16, tile_rows=256, force_multipass=True))
    assert out2_bf16.shape == (batch2, noutput2)
    assert jnp.allclose(out2_bf16, ref2, atol=5e-2, rtol=5e-2), "case2 bf16 mismatch"

    print("KERNEL_OK")
</pallas_src>

<mosaic_0001>
module attributes {stable_mosaic.version = 11 : i64} {
  func.func @kernel(%arg0: i32, %arg1: memref<8x16xf32, #tpu.memory_space<vmem>>, %arg2: memref<16x128xf32, #tpu.memory_space<vmem>>, %arg3: memref<2x128xf32, #tpu.memory_space<vmem>>, %arg4: memref<128x128xf32, #tpu.memory_space<vmem>>, %arg5: memref<2x128xf32, #tpu.memory_space<vmem>>, %arg6: memref<128x128xf32, #tpu.memory_space<vmem>>, %arg7: memref<1x128xf32, #tpu.memory_space<vmem>>, %arg8: memref<8x128xf32, #tpu.memory_space<vmem>>) attributes {dimension_semantics = [#tpu.dimension_semantics<arbitrary>], iteration_bounds = array<i64: 1>, scalar_prefetch = 0 : i64, scratch_operands = 0 : i64, tpu.core_type = #tpu.core_type<tc>, window_params = [{pipeline_mode = #tpu.pipeline_mode<synchronous>, transform_indices = @transform_0, window_bounds = array<i64: 8, 16>}, {pipeline_mode = #tpu.pipeline_mode<synchronous>, transform_indices = @transform_1, window_bounds = array<i64: 16, 128>}, {pipeline_mode = #tpu.pipeline_mode<synchronous>, transform_indices = @transform_2, window_bounds = array<i64: 2, 128>}, {pipeline_mode = #tpu.pipeline_mode<synchronous>, transform_indices = @transform_3, window_bounds = array<i64: 128, 128>}, {pipeline_mode = #tpu.pipeline_mode<synchronous>, transform_indices = @transform_4, window_bounds = array<i64: 2, 128>}, {pipeline_mode = #tpu.pipeline_mode<synchronous>, transform_indices = @transform_5, window_bounds = array<i64: 128, 128>}, {pipeline_mode = #tpu.pipeline_mode<synchronous>, transform_indices = @transform_6, window_bounds = array<i64: 1, 128>}, {pipeline_mode = #tpu.pipeline_mode<synchronous>, transform_indices = @transform_7, window_bounds = array<i64: 8, 128>}]} {
    %0 = tpu.iota {dimensions = array<i32: 0>} : vector<8x1xi32>
    %c8_i32 = arith.constant 8 : i32
    %1 = vector.broadcast %c8_i32 : i32 to vector<8x1xi32>
    %2 = arith.cmpi slt, %0, %1 : vector<8x1xi32>
    %3 = arith.extui %2 : vector<8x1xi1> to vector<8x1xi32>
    %4 = arith.sitofp %3 : vector<8x1xi32> to vector<8x1xf32>
    %c0 = arith.constant 0 : index
    %c0_0 = arith.constant 0 : index
    %5 = vector.load %arg1[%c0, %c0_0] : memref<8x16xf32, #tpu.memory_space<vmem>>, vector<8x16xf32>
    %c0_1 = arith.constant 0 : index
    %c0_2 = arith.constant 0 : index
    %6 = vector.load %arg2[%c0_1, %c0_2] : memref<16x128xf32, #tpu.memory_space<vmem>>, vector<16x128xf32>
    %cst = arith.constant dense<0.000000e+00> : vector<8x128xf32>
    %7 = tpu.matmul %5, %6, %cst {dimension_numbers = #tpu.dot_dimension_numbers<[1], [0], [0], [1], [0, 0, 1, 1], [], []>} : vector<8x16xf32>, vector<16x128xf32>, vector<8x128xf32> -> vector<8x128xf32>
    %8 = vector.broadcast %4 : vector<8x1xf32> to vector<8x128xf32>
    %9 = arith.mulf %7, %8 : vector<8x128xf32>
    %cst_3 = arith.constant dense<0.000000e+00> : vector<128xf32>
    %10 = vector.multi_reduction <add>, %9, %cst_3 [0] : vector<8x128xf32> to vector<128xf32>
    %11 = vector.shape_cast %10 : vector<128xf32> to vector<1x128xf32>
    %cst_4 = arith.constant 1.250000e-01 : f32
    %12 = vector.broadcast %cst_4 : f32 to vector<1x128xf32>
    %13 = arith.mulf %11, %12 : vector<1x128xf32>
    %14 = arith.mulf %9, %7 : vector<8x128xf32>
    %cst_5 = arith.constant dense<0.000000e+00> : vector<128xf32>
    %15 = vector.multi_reduction <add>, %14, %cst_5 [0] : vector<8x128xf32> to vector<128xf32>
    %16 = vector.shape_cast %15 : vector<128xf32> to vector<1x128xf32>
    %cst_6 = arith.constant 1.250000e-01 : f32
    %17 = vector.broadcast %cst_6 : f32 to vector<1x128xf32>
    %18 = arith.mulf %16, %17 : vector<1x128xf32>
    %19 = arith.mulf %13, %13 : vector<1x128xf32>
    %20 = arith.subf %18, %19 : vector<1x128xf32>
    %cst_7 = arith.constant 0.000000e+00 : f32
    %21 = vector.broadcast %cst_7 : f32 to vector<1x128xf32>
    %22 = arith.maximumf %20, %21 : vector<1x128xf32>
    %c0_8 = arith.constant 0 : index
    %c0_9 = arith.constant 0 : index
    %23 = vector.load %arg3[%c0_8, %c0_9] : memref<2x128xf32, #tpu.memory_space<vmem>>, vector<1x128xf32>
    %cst_10 = arith.constant 9.99999974E-6 : f32
    %24 = vector.broadcast %cst_10 : f32 to vector<1x128xf32>
    %25 = arith.addf %22, %24 : vector<1x128xf32>
    %26 = math.rsqrt %25 : vector<1x128xf32>
    %27 = arith.mulf %23, %26 : vector<1x128xf32>
    %c1 = arith.constant 1 : index
    %c0_11 = arith.constant 0 : index
    %28 = vector.load %arg3[%c1, %c0_11] : memref<2x128xf32, #tpu.memory_space<vmem>>, vector<1x128xf32>
    %29 = arith.mulf %13, %27 : vector<1x128xf32>
    %30 = arith.subf %28, %29 : vector<1x128xf32>
    %31 = vector.broadcast %27 : vector<1x128xf32> to vector<8x128xf32>
    %32 = arith.mulf %7, %31 : vector<8x128xf32>
    %33 = vector.broadcast %30 : vector<1x128xf32> to vector<8x128xf32>
    %34 = arith.addf %32, %33 : vector<8x128xf32>
    %cst_12 = arith.constant 0.000000e+00 : f32
    %35 = vector.broadcast %cst_12 : f32 to vector<8x128xf32>
    %36 = arith.maximumf %34, %35 : vector<8x128xf32>
    %c0_13 = arith.constant 0 : index
    %c0_14 = arith.constant 0 : index
    %37 = vector.load %arg4[%c0_13, %c0_14] : memref<128x128xf32, #tpu.memory_space<vmem>>, vector<128x128xf32>
    %cst_15 = arith.constant dense<0.000000e+00> : vector<8x128xf32>
    %38 = tpu.matmul %36, %37, %cst_15 {dimension_numbers = #tpu.dot_dimension_numbers<[1], [0], [0], [1], [0, 0, 1, 1], [], []>} : vector<8x128xf32>, vector<128x128xf32>, vector<8x128xf32> -> vector<8x128xf32>
    %39 = vector.broadcast %4 : vector<8x1xf32> to vector<8x128xf32>
    %40 = arith.mulf %38, %39 : vector<8x128xf32>
    %cst_16 = arith.constant dense<0.000000e+00> : vector<128xf32>
    %41 = vector.multi_reduction <add>, %40, %cst_16 [0] : vector<8x128xf32> to vector<128xf32>
    %42 = vector.shape_cast %41 : vector<128xf32> to vector<1x128xf32>
    %cst_17 = arith.constant 1.250000e-01 : f32
    %43 = vector.broadcast %cst_17 : f32 to vector<1x128xf32>
    %44 = arith.mulf %42, %43 : vector<1x128xf32>
    %45 = arith.mulf %40, %38 : vector<8x128xf32>
    %cst_18 = arith.constant dense<0.000000e+00> : vector<128xf32>
    %46 = vector.multi_reduction <add>, %45, %cst_18 [0] : vector<8x128xf32> to vector<128xf32>
    %47 = vector.shape_cast %46 : vector<128xf32> to vector<1x128xf32>
    %cst_19 = arith.constant 1.250000e-01 : f32
    %48 = vector.broadcast %cst_19 : f32 to vector<1x128xf32>
    %49 = arith.mulf %47, %48 : vector<1x128xf32>
    %50 = arith.mulf %44, %44 : vector<1x128xf32>
    %51 = arith.subf %49, %50 : vector<1x128xf32>
    %cst_20 = arith.constant 0.000000e+00 : f32
    %52 = vector.broadcast %cst_20 : f32 to vector<1x128xf32>
    %53 = arith.maximumf %51, %52 : vector<1x128xf32>
    %c0_21 = arith.constant 0 : index
    %c0_22 = arith.constant 0 : index
    %54 = vector.load %arg5[%c0_21, %c0_22] : memref<2x128xf32, #tpu.memory_space<vmem>>, vector<1x128xf32>
    %cst_23 = arith.constant 9.99999974E-6 : f32
    %55 = vector.broadcast %cst_23 : f32 to vector<1x128xf32>
    %56 = arith.addf %53, %55 : vector<1x128xf32>
    %57 = math.rsqrt %56 : vector<1x128xf32>
    %58 = arith.mulf %54, %57 : vector<1x128xf32>
    %c1_24 = arith.constant 1 : index
    %c0_25 = arith.constant 0 : index
    %59 = vector.load %arg5[%c1_24, %c0_25] : memref<2x128xf32, #tpu.memory_space<vmem>>, vector<1x128xf32>
    %60 = arith.mulf %44, %58 : vector<1x128xf32>
    %61 = arith.subf %59, %60 : vector<1x128xf32>
    %62 = vector.broadcast %58 : vector<1x128xf32> to vector<8x128xf32>
    %63 = arith.mulf %38, %62 : vector<8x128xf32>
    %64 = vector.broadcast %61 : vector<1x128xf32> to vector<8x128xf32>
    %65 = arith.addf %63, %64 : vector<8x128xf32>
    %cst_26 = arith.constant 0.000000e+00 : f32
    %66 = vector.broadcast %cst_26 : f32 to vector<8x128xf32>
    %67 = arith.maximumf %65, %66 : vector<8x128xf32>
    %c0_27 = arith.constant 0 : index
    %c0_28 = arith.constant 0 : index
    %68 = vector.load %arg6[%c0_27, %c0_28] : memref<128x128xf32, #tpu.memory_space<vmem>>, vector<128x128xf32>
    %cst_29 = arith.constant dense<0.000000e+00> : vector<8x128xf32>
    %69 = tpu.matmul %67, %68, %cst_29 {dimension_numbers = #tpu.dot_dimension_numbers<[1], [0], [0], [1], [0, 0, 1, 1], [], []>} : vector<8x128xf32>, vector<128x128xf32>, vector<8x128xf32> -> vector<8x128xf32>
    %c0_30 = arith.constant 0 : index
    %c0_31 = arith.constant 0 : index
    %70 = vector.load %arg7[%c0_30, %c0_31] : memref<1x128xf32, #tpu.memory_space<vmem>>, vector<1x128xf32>
    %71 = vector.broadcast %70 : vector<1x128xf32> to vector<8x128xf32>
    %72 = arith.addf %69, %71 : vector<8x128xf32>
    %cst_32 = arith.constant 0.000000e+00 : f32
    %73 = vector.broadcast %cst_32 : f32 to vector<8x128xf32>
    %74 = arith.maximumf %72, %73 : vector<8x128xf32>
    %c0_33 = arith.constant 0 : index
    %c0_34 = arith.constant 0 : index
    %75 = vector.load %arg8[%c0_33, %c0_34] : memref<8x128xf32, #tpu.memory_space<vmem>>, vector<8x128xf32>
    tpu.vector_store %arg8[%c0_33, %c0_34], %74 {strides = array<i32>} : memref<8x128xf32, #tpu.memory_space<vmem>>, vector<8x128xf32>,
    return
  }
  func.func @transform_0(%arg0: i32) -> (i32, i32) {
    %c0_i32 = arith.constant 0 : i32
    %c0_i32_0 = arith.constant 0 : i32
    %c0_i32_1 = arith.constant 0 : i32
    return %c0_i32, %c0_i32_0 : i32, i32
  }
  func.func @transform_1(%arg0: i32) -> (i32, i32) {
    %c0_i32 = arith.constant 0 : i32
    %c0_i32_0 = arith.constant 0 : i32
    %c0_i32_1 = arith.constant 0 : i32
    return %c0_i32, %c0_i32_0 : i32, i32
  }
  func.func @transform_2(%arg0: i32) -> (i32, i32) {
    %c0_i32 = arith.constant 0 : i32
    %c0_i32_0 = arith.constant 0 : i32
    %c0_i32_1 = arith.constant 0 : i32
    return %c0_i32, %c0_i32_0 : i32, i32
  }
  func.func @transform_3(%arg0: i32) -> (i32, i32) {
    %c0_i32 = arith.constant 0 : i32
    %c0_i32_0 = arith.constant 0 : i32
    %c0_i32_1 = arith.constant 0 : i32
    return %c0_i32, %c0_i32_0 : i32, i32
  }
  func.func @transform_4(%arg0: i32) -> (i32, i32) {
    %c0_i32 = arith.constant 0 : i32
    %c0_i32_0 = arith.constant 0 : i32
    %c0_i32_1 = arith.constant 0 : i32
    return %c0_i32, %c0_i32_0 : i32, i32
  }
  func.func @transform_5(%arg0: i32) -> (i32, i32) {
    %c0_i32 = arith.constant 0 : i32
    %c0_i32_0 = arith.constant 0 : i32
    %c0_i32_1 = arith.constant 0 : i32
    return %c0_i32, %c0_i32_0 : i32, i32
  }
  func.func @transform_6(%arg0: i32) -> (i32, i32) {
    %c0_i32 = arith.constant 0 : i32
    %c0_i32_0 = arith.constant 0 : i32
    %c0_i32_1 = arith.constant 0 : i32
    return %c0_i32, %c0_i32_0 : i32, i32
  }
  func.func @transform_7(%arg0: i32) -> (i32, i32) {
    %c0_i32 = arith.constant 0 : i32
    %c0_i32_0 = arith.constant 0 : i32
    %c0_i32_1 = arith.constant 0 : i32
    return %c0_i32, %c0_i32_0 : i32, i32
  }
}

</mosaic_0001>

<llo_original>
// kernel: tpu_custom_call.1
$region0: #{tpu_custom_call.1}
  #allocation0 [shape = 'u32[]', space=smem, size = 0x4, offset = 0x4, fixed_abs, tag = 'smem constant byte address 0x4 - core index']
  #allocation1 [shape = 'u32[144,128]{1,0:T(1,128)}', space=vmem, size = 0x12000, scoped, tag = 'internal scratch']
  %s0 = inlined_call_operand.hbm [shape: f32[8,16], index: 0, kind: input, shape index: {}]
  %s1 = inlined_call_operand.hbm [shape: f32[16,128], index: 1, kind: input, shape index: {}]
  %s2 = inlined_call_operand.vmem [shape: f32[2,128], index: 2, kind: input, shape index: {}]
  %s3 = inlined_call_operand.hbm [shape: f32[128,128], index: 3, kind: input, shape index: {}]
  %s4 = inlined_call_operand.vmem [shape: f32[2,128], index: 4, kind: input, shape index: {}]
  %s5 = inlined_call_operand.hbm [shape: f32[128,128], index: 5, kind: input, shape index: {}]
  %s6 = inlined_call_operand.vmem [shape: f32[1,128], index: 6, kind: input, shape index: {}]
  %s7 = inlined_call_operand.hbm [shape: f32[8,128], index: 7, kind: output, shape index: {}]
  %s8 = sld [smem:[#allocation0]]
  $region54: #{tpu_custom_call.1} parent=0
    _
  %s10 = ssub.s32 1, %s8
  %s11 = scalar_select 0, %s10, %s8
  $region1: #{tpu_custom_call.1} parent=0
    #allocation2 [shape = 'u8[4096]{0}', space=vmem, size = 0x1000, scoped, tag = 'input window, operand 0, single buffered']
    #allocation3 [shape = 's32[1]{0}', space=sflag, size = 0x4, scoped, tag = 'scoped memory for tpu_custom_call.1']
    #allocation4 [shape = 's32[1]{0}', space=sflag, size = 0x4, scoped, tag = 'scoped memory for tpu_custom_call.1']
    #allocation5 [shape = 'u8[8192]{0}', space=vmem, size = 0x2000, scoped, tag = 'input window, operand 1, single buffered']
    #allocation6 [shape = 's32[1]{0}', space=sflag, size = 0x4, scoped, tag = 'scoped memory for tpu_custom_call.1']
    #allocation7 [shape = 'u8[65536]{0}', space=vmem, size = 0x10000, scoped, tag = 'input window, operand 3, single buffered']
    #allocation8 [shape = 'u8[65536]{0}', space=vmem, size = 0x10000, scoped, tag = 'input window, operand 5, single buffered']
    #allocation9 [shape = 's32[1]{0}', space=sflag, size = 0x4, scoped, tag = 'scoped memory for tpu_custom_call.1']
    #allocation10 [shape = 'u8[4096]{0}', space=vmem, size = 0x1000, scoped, tag = 'output window, operand 0, single buffered']
    %12 = vsyncpa [#allocation3], 0
    %13 = vsyncpa [#allocation6], 0
    %14 = vsyncpa [#allocation9], 0
    %15 = vsyncpa [#allocation4], 0
    // Predicated region
    $region2: #{tpu_custom_call.1} parent=1 // pred_check
      _
    $region3: #{tpu_custom_call.1} parent=1 // pred_check_branch
      %17 = sbr.rel (0) target = $region5
    $region4: #{tpu_custom_call.1} parent=1 // pred_region
      %s19 = ssub.s32 128, 128
      %20 = vsyncadd [#allocation3], %s19
      %s22 = sshll.u32 [#allocation2], 4
      %s23 = int_to_ptr.vmem [resolvable:$true] %s22
      %25 = dma.hbm_to_vmem [thread:$0]  %s0, 128, %s23, [#allocation3]
    $region5: #{tpu_custom_call.1} parent=1 // pred_fallthru
      _
    // Predicated region
    $region6: #{tpu_custom_call.1} parent=1 // pred_check
      _
    $region7: #{tpu_custom_call.1} parent=1 // pred_check_branch
      %27 = sbr.rel (0) target = $region9
    $region8: #{tpu_custom_call.1} parent=1 // pred_region
      %s29 = ssub.s32 256, 256
      %30 = vsyncadd [#allocation6], %s29
      %s31 = sshll.u32 [#allocation5], 4
      %s32 = int_to_ptr.vmem [resolvable:$true] %s31
      %37 = dma.hbm_to_vmem [thread:$0]  %s1, 256, %s32, [#allocation6], 128, 128, 8
    $region9: #{tpu_custom_call.1} parent=1 // pred_fallthru
      _
    // Predicated region
    $region10: #{tpu_custom_call.1} parent=1 // pred_check
      _
    $region11: #{tpu_custom_call.1} parent=1 // pred_check_branch
      %39 = sbr.rel (0) target = $region13
    $region12: #{tpu_custom_call.1} parent=1 // pred_region
      _
    $region13: #{tpu_custom_call.1} parent=1 // pred_fallthru
      _
    // Predicated region
    $region14: #{tpu_custom_call.1} parent=1 // pred_check
      _
    $region15: #{tpu_custom_call.1} parent=1 // pred_check_branch
      %41 = sbr.rel (0) target = $region17
    $region16: #{tpu_custom_call.1} parent=1 // pred_region
      %s43 = ssub.s32 2048, 2048
      %44 = vsyncadd [#allocation6], %s43
      %s45 = sshll.u32 [#allocation7], 4
      %s46 = int_to_ptr.vmem [resolvable:$true] %s45
      %51 = dma.hbm_to_vmem [thread:$0]  %s3, 2048, %s46, [#allocation6], 128, 128, 8
    $region17: #{tpu_custom_call.1} parent=1 // pred_fallthru
      _
    // Predicated region
    $region18: #{tpu_custom_call.1} parent=1 // pred_check
      _
    $region19: #{tpu_custom_call.1} parent=1 // pred_check_branch
      %53 = sbr.rel (0) target = $region21
    $region20: #{tpu_custom_call.1} parent=1 // pred_region
      _
    $region21: #{tpu_custom_call.1} parent=1 // pred_fallthru
      _
    // Predicated region
    $region22: #{tpu_custom_call.1} parent=1 // pred_check
      _
    $region23: #{tpu_custom_call.1} parent=1 // pred_check_branch
      %55 = sbr.rel (0) target = $region25
    $region24: #{tpu_custom_call.1} parent=1 // pred_region
      %s57 = ssub.s32 2048, 2048
      %58 = vsyncadd [#allocation9], %s57
      %s59 = sshll.u32 [#allocation8], 4
      %s60 = int_to_ptr.vmem [resolvable:$true] %s59
      %65 = dma.hbm_to_vmem [thread:$0]  %s5, 2048, %s60, [#allocation9], 128, 128, 8
    $region25: #{tpu_custom_call.1} parent=1 // pred_fallthru
      _
    // Predicated region
    $region26: #{tpu_custom_call.1} parent=1 // pred_check
      _
    $region27: #{tpu_custom_call.1} parent=1 // pred_check_branch
      %67 = sbr.rel (0) target = $region29
    $region28: #{tpu_custom_call.1} parent=1 // pred_region
      _
    $region29: #{tpu_custom_call.1} parent=1 // pred_fallthru
      _
    // Predicated region
    $region30: #{tpu_custom_call.1} parent=1 // pred_check
      _
    $region31: #{tpu_custom_call.1} parent=1 // pred_check_branch
      %69 = sbr.rel (0) target = $region33
    $region32: #{tpu_custom_call.1} parent=1 // pred_region
      %70 = dma.done [#allocation3], 128
    $region33: #{tpu_custom_call.1} parent=1 // pred_fallthru
      _
    // Predicated region
    $region34: #{tpu_custom_call.1} parent=1 // pred_check
      _
    $region35: #{tpu_custom_call.1} parent=1 // pred_check_branch
      %72 = sbr.rel (0) target = $region37
    $region36: #{tpu_custom_call.1} parent=1 // pred_region
      %73 = dma.done [#allocation6], 256
    $region37: #{tpu_custom_call.1} parent=1 // pred_fallthru
      _
    // Predicated region
    $region38: #{tpu_custom_call.1} parent=1 // pred_check
      _
    $region39: #{tpu_custom_call.1} parent=1 // pred_check_branch
      %75 = sbr.rel (0) target = $region41
    $region40: #{tpu_custom_call.1} parent=1 // pred_region
      %76 = dma.done [#allocation6], 2048
    $region41: #{tpu_custom_call.1} parent=1 // pred_fallthru
      _
    // Predicated region
    $region42: #{tpu_custom_call.1} parent=1 // pred_check
      _
    $region43: #{tpu_custom_call.1} parent=1 // pred_check_branch
      %78 = sbr.rel (0) target = $region45
    $region44: #{tpu_custom_call.1} parent=1 // pred_region
      %79 = dma.done [#allocation9], 2048
    $region45: #{tpu_custom_call.1} parent=1 // pred_fallthru
      _
    %v80 = vlaneseq
    %v81 = vshrl.u32 %v80, 7
    %vm82 = vcmp.lt.s32.totalorder %v81, 8
    %v83 = vsel %vm82, 1, 0
    %v84 = vcvt.s32.f32 %v83
    %v85 = vld [vmem:[#allocation2] sm:$0xff]
    %v86 = vld [vmem:[#allocation5] sm:$0xff]
    %v87 = vld [vmem:[#allocation5 + $0x8] sm:$0xff]
    %vm88 = vcmask 130048
    %v90 = vsel %vm88, %v85, 0
    %92 = vmatprep.subr.mxu0 0.0
    %93 = vmatpush1.msra.mxu0 %v86
    %94 = vmatprep.subr.mxu0 0.0
    %95 = vmatpush1.msra.mxu0 %v87
    %96 = vmatprep.subr.mxu0 0.0
    %97 = vmatpush1.msra.mxu0 0.0
    %98 = vmatprep.subr.mxu0 0.0
    %99 = vmatpush1.msra.mxu0 0.0
    %100 = vmatprep.subr.mxu0 0.0
    %101 = vmatpush1.msra.mxu0 0.0
    %102 = vmatprep.subr.mxu0 0.0
    %103 = vmatpush1.msra.mxu0 0.0
    %104 = vmatprep.subr.mxu0 0.0
    %105 = vmatpush1.msra.mxu0 0.0
    %106 = vmatprep.subr.mxu0 0.0
    %107 = vmatpush1.msra.mxu0 0.0
    %108 = vmatprep.subr.mxu0 0.0
    %109 = vmatpush1.msra.mxu0 0.0
    %110 = vmatprep.subr.mxu0 0.0
    %111 = vmatpush1.msra.mxu0 0.0
    %112 = vmatprep.subr.mxu0 0.0
    %113 = vmatpush1.msra.mxu0 0.0
    %114 = vmatprep.subr.mxu0 0.0
    %115 = vmatpush1.msra.mxu0 0.0
    %116 = vmatprep.subr.mxu0 0.0
    %117 = vmatpush1.msra.mxu0 0.0
    %118 = vmatprep.subr.mxu0 0.0
    %119 = vmatpush1.msra.mxu0 0.0
    %120 = vmatprep.subr.mxu0 0.0
    %121 = vmatpush1.msra.mxu0 0.0
    %122 = vmatprep.subr.mxu0 0.0
    %123 = vmatpush1.msra.mxu0 0.0
    %124 = vmatprep.subr.mxu0 0.0
    %125 = vmatpush1.msra.mxu0 0.0
    %126 = vmatprep.subr.mxu0 0.0
    %127 = vmatpush1.msra.mxu0 0.0
    %128 = vmatprep.subr.mxu0 0.0
    %129 = vmatpush1.msra.mxu0 0.0
    %130 = vmatprep.subr.mxu0 0.0
    %131 = vmatpush1.msra.mxu0 0.0
    %132 = vmatprep.subr.mxu0 0.0
    %133 = vmatpush1.msra.mxu0 0.0
    %134 = vmatprep.subr.mxu0 0.0
    %135 = vmatpush1.msra.mxu0 0.0
    %136 = vmatprep.subr.mxu0 0.0
    %137 = vmatpush1.msra.mxu0 0.0
    %138 = vmatprep.subr.mxu0 0.0
    %139 = vmatpush1.msra.mxu0 0.0
    %140 = vmatprep.subr.mxu0 0.0
    %141 = vmatpush1.msra.mxu0 0.0
    %142 = vmatprep.subr.mxu0 0.0
    %143 = vmatpush1.msra.mxu0 0.0
    %144 = vmatprep.subr.mxu0 0.0
    %145 = vmatpush1.msra.mxu0 0.0
    %146 = vmatprep.subr.mxu0 0.0
    %147 = vmatpush1.msra.mxu0 0.0
    %148 = vmatprep.subr.mxu0 0.0
    %149 = vmatpush1.msra.mxu0 0.0
    %150 = vmatprep.subr.mxu0 0.0
    %151 = vmatpush1.msra.mxu0 0.0
    %152 = vmatprep.subr.mxu0 0.0
    %153 = vmatpush1.msra.mxu0 0.0
    %154 = vmatprep.subr.mxu0 0.0
    %155 = vmatpush1.msra.mxu0 0.0
    %156 = vmatprep.mubr.f32.mxu0 0.0
    %157 = vmatmul.mubr.f32.gmra.mrb[0].mxu0 %v90
    %v158 = vpop.f32.mrb[0].mxu0
    %v159 = vadd.f32 0.0, %v158
    %v160 = vpop.f32.mrb[0].mxu0
    %161 = vdwg.mxu0
    %v162 = vmul.f32 %v159, %v84
    %v163 = vrot.slane %v162, 4
    %v164 = vadd.f32 %v162, %v163
    %v165 = vrot.slane %v164, 2
    %v166 = vadd.f32 %v164, %v165
    %v167 = vrot.slane %v166, 1
    %v168 = vadd.f32 %v166, %v167
    %v169 = vmul.f32 %v168, 0.125
    %v170 = vmul.f32 %v162, %v159
    %v171 = vrot.slane %v170, 4
    %v172 = vadd.f32 %v170, %v171
    %v173 = vrot.slane %v172, 2
    %v174 = vadd.f32 %v172, %v173
    %v175 = vrot.slane %v174, 1
    %v176 = vadd.f32 %v174, %v175
    %v177 = vmul.f32 %v176, 0.125
    %v178 = vmul.f32 %v169, %v169
    %v179 = vsub.f32 %v177, %v178
    %v180 = vmax.f32 %v179, 0.0
    %v181 = vld [vmem:[%s2] sm:$0x1]
    %v182 = vadd.f32 %v180, 1e-05
    %v183 = vrsqrt.pop %v182
    %v184 = vmul.f32 %v181, %v183
    %v185 = vld [vmem:[%s2 + $0x1] sm:$0x1]
    %v186 = vmul.f32 %v169, %v184
    %v187 = vsub.f32 %v185, %v186
    %v188 = vlaneseq
    %v189 = vshrl.u32 %v188, 7
    %v190 = vsub.s32 0, %v189
    %v191 = vrot.slane %v184, %v190
    %v192 = vmul.f32 %v159, %v191
    %v193 = vlaneseq
    %v194 = vshrl.u32 %v193, 7
    %v195 = vsub.s32 0, %v194
    %v196 = vrot.slane %v187, %v195
    %v197 = vadd.f32 %v192, %v196
    %v198 = vmax.f32 %v197, 0.0
    %v199 = vld [vmem:[#allocation7] sm:$0xff]
    %v200 = vld [vmem:[#allocation7 + $0x8] sm:$0xff]
    %v201 = vld [vmem:[#allocation7 + $0x10] sm:$0xff]
    %v202 = vld [vmem:[#allocation7 + $0x18] sm:$0xff]
    %v203 = vld [vmem:[#allocation7 + $0x20] sm:$0xff]
    %v204 = vld [vmem:[#allocation7 + $0x28] sm:$0xff]
    %v205 = vld [vmem:[#allocation7 + $0x30] sm:$0xff]
    %v206 = vld [vmem:[#allocation7 + $0x38] sm:$0xff]
    %v207 = vld [vmem:[#allocation7 + $0x40] sm:$0xff]
    %v208 = vld [vmem:[#allocation7 + $0x48] sm:$0xff]
    %v209 = vld [vmem:[#allocation7 + $0x50] sm:$0xff]
    %v210 = vld [vmem:[#allocation7 + $0x58] sm:$0xff]
    %v211 = vld [vmem:[#allocation7 + $0x60] sm:$0xff]
    %v212 = vld [vmem:[#allocation7 + $0x68] sm:$0xff]
    %v213 = vld [vmem:[#allocation7 + $0x70] sm:$0xff]
    %v214 = vld [vmem:[#allocation7 + $0x78] sm:$0xff]
    %215 = vmatprep.subr.mxu0 0.0
    %216 = vmatpush1.msra.mxu0 %v199
    %217 = vmatprep.subr.mxu0 0.0
    %218 = vmatpush1.msra.mxu0 %v200
    %219 = vmatprep.subr.mxu0 0.0
    %220 = vmatpush1.msra.mxu0 %v201
    %221 = vmatprep.subr.mxu0 0.0
    %222 = vmatpush1.msra.mxu0 %v202
    %223 = vmatprep.subr.mxu0 0.0
    %224 = vmatpush1.msra.mxu0 %v203
    %225 = vmatprep.subr.mxu0 0.0
    %226 = vmatpush1.msra.mxu0 %v204
    %227 = vmatprep.subr.mxu0 0.0
    %228 = vmatpush1.msra.mxu0 %v205
    %229 = vmatprep.subr.mxu0 0.0
    %230 = vmatpush1.msra.mxu0 %v206
    %231 = vmatprep.subr.mxu0 0.0
    %232 = vmatpush1.msra.mxu0 %v207
    %233 = vmatprep.subr.mxu0 0.0
    %234 = vmatpush1.msra.mxu0 %v208
    %235 = vmatprep.subr.mxu0 0.0
    %236 = vmatpush1.msra.mxu0 %v209
    %237 = vmatprep.subr.mxu0 0.0
    %238 = vmatpush1.msra.mxu0 %v210
    %239 = vmatprep.subr.mxu0 0.0
    %240 = vmatpush1.msra.mxu0 %v211
    %241 = vmatprep.subr.mxu0 0.0
    %242 = vmatpush1.msra.mxu0 %v212
    %243 = vmatprep.subr.mxu0 0.0
    %244 = vmatpush1.msra.mxu0 %v213
    %245 = vmatprep.subr.mxu0 0.0
    %246 = vmatpush1.msra.mxu0 %v214
    %247 = vmatprep.subr.mxu0 0.0
    %248 = vmatpush1.msra.mxu0 0.0
    %249 = vmatprep.subr.mxu0 0.0
    %250 = vmatpush1.msra.mxu0 0.0
    %251 = vmatprep.subr.mxu0 0.0
    %252 = vmatpush1.msra.mxu0 0.0
    %253 = vmatprep.subr.mxu0 0.0
    %254 = vmatpush1.msra.mxu0 0.0
    %255 = vmatprep.subr.mxu0 0.0
    %256 = vmatpush1.msra.mxu0 0.0
    %257 = vmatprep.subr.mxu0 0.0
    %258 = vmatpush1.msra.mxu0 0.0
    %259 = vmatprep.subr.mxu0 0.0
    %260 = vmatpush1.msra.mxu0 0.0
    %261 = vmatprep.subr.mxu0 0.0
    %262 = vmatpush1.msra.mxu0 0.0
    %263 = vmatprep.subr.mxu0 0.0
    %264 = vmatpush1.msra.mxu0 0.0
    %265 = vmatprep.subr.mxu0 0.0
    %266 = vmatpush1.msra.mxu0 0.0
    %267 = vmatprep.subr.mxu0 0.0
    %268 = vmatpush1.msra.mxu0 0.0
    %269 = vmatprep.subr.mxu0 0.0
    %270 = vmatpush1.msra.mxu0 0.0
    %271 = vmatprep.subr.mxu0 0.0
    %272 = vmatpush1.msra.mxu0 0.0
    %273 = vmatprep.subr.mxu0 0.0
    %274 = vmatpush1.msra.mxu0 0.0
    %275 = vmatprep.subr.mxu0 0.0
    %276 = vmatpush1.msra.mxu0 0.0
    %277 = vmatprep.subr.mxu0 0.0
    %278 = vmatpush1.msra.mxu0 0.0
    %279 = vmatprep.mubr.f32.mxu0 0.0
    %280 = vmatmul.mubr.f32.gmra.mrb[0].mxu0 %v198
    %v281 = vpop.f32.mrb[0].mxu0
    %v282 = vadd.f32 0.0, %v281
    %v283 = vpop.f32.mrb[0].mxu0
    %284 = vdwg.mxu0
    %v285 = vmul.f32 %v282, %v84
    %v286 = vrot.slane %v285, 4
    %v287 = vadd.f32 %v285, %v286
    %v288 = vrot.slane %v287, 2
    %v289 = vadd.f32 %v287, %v288
    %v290 = vrot.slane %v289, 1
    %v291 = vadd.f32 %v289, %v290
    %v292 = vmul.f32 %v291, 0.125
    %v293 = vmul.f32 %v285, %v282
    %v294 = vrot.slane %v293, 4
    %v295 = vadd.f32 %v293, %v294
    %v296 = vrot.slane %v295, 2
    %v297 = vadd.f32 %v295, %v296
    %v298 = vrot.slane %v297, 1
    %v299 = vadd.f32 %v297, %v298
    %v300 = vmul.f32 %v299, 0.125
    %v301 = vmul.f32 %v292, %v292
    %v302 = vsub.f32 %v300, %v301
    %v303 = vmax.f32 %v302, 0.0
    %v304 = vld [vmem:[%s4] sm:$0x1]
    %v305 = vadd.f32 %v303, 1e-05
    %v306 = vrsqrt.pop %v305
    %v307 = vmul.f32 %v304, %v306
    %v308 = vld [vmem:[%s4 + $0x1] sm:$0x1]
    %v309 = vmul.f32 %v292, %v307
    %v310 = vsub.f32 %v308, %v309
    %v311 = vlaneseq
    %v312 = vshrl.u32 %v311, 7
    %v313 = vsub.s32 0, %v312
    %v314 = vrot.slane %v307, %v313
    %v315 = vmul.f32 %v282, %v314
    %v316 = vlaneseq
    %v317 = vshrl.u32 %v316, 7
    %v318 = vsub.s32 0, %v317
    %v319 = vrot.slane %v310, %v318
    %v320 = vadd.f32 %v315, %v319
    %v321 = vmax.f32 %v320, 0.0
    %v322 = vld [vmem:[#allocation8] sm:$0xff]
    %v323 = vld [vmem:[#allocation8 + $0x8] sm:$0xff]
    %v324 = vld [vmem:[#allocation8 + $0x10] sm:$0xff]
    %v325 = vld [vmem:[#allocation8 + $0x18] sm:$0xff]
    %v326 = vld [vmem:[#allocation8 + $0x20] sm:$0xff]
    %v327 = vld [vmem:[#allocation8 + $0x28] sm:$0xff]
    %v328 = vld [vmem:[#allocation8 + $0x30] sm:$0xff]
    %v329 = vld [vmem:[#allocation8 + $0x38] sm:$0xff]
    %v330 = vld [vmem:[#allocation8 + $0x40] sm:$0xff]
    %v331 = vld [vmem:[#allocation8 + $0x48] sm:$0xff]
    %v332 = vld [vmem:[#allocation8 + $0x50] sm:$0xff]
    %v333 = vld [vmem:[#allocation8 + $0x58] sm:$0xff]
    %v334 = vld [vmem:[#allocation8 + $0x60] sm:$0xff]
    %v335 = vld [vmem:[#allocation8 + $0x68] sm:$0xff]
    %v336 = vld [vmem:[#allocation8 + $0x70] sm:$0xff]
    %v337 = vld [vmem:[#allocation8 + $0x78] sm:$0xff]
    %v338 = vld [vmem:[%s6] sm:$0x1]
    %v340 = vlaneseq
    %v341 = vshrl.u32 %v340, 7
    %v342 = vsub.s32 0, %v341
    %v343 = vrot.slane %v338, %v342
    %345 = vmatprep.subr.mxu0 0.0
    %346 = vmatpush1.msra.mxu0 %v322
    %347 = vmatprep.subr.mxu0 0.0
    %348 = vmatpush1.msra.mxu0 %v323
    %349 = vmatprep.subr.mxu0 0.0
    %350 = vmatpush1.msra.mxu0 %v324
    %351 = vmatprep.subr.mxu0 0.0
    %352 = vmatpush1.msra.mxu0 %v325
    %353 = vmatprep.subr.mxu0 0.0
    %354 = vmatpush1.msra.mxu0 %v326
    %355 = vmatprep.subr.mxu0 0.0
    %356 = vmatpush1.msra.mxu0 %v327
    %357 = vmatprep.subr.mxu0 0.0
    %358 = vmatpush1.msra.mxu0 %v328
    %359 = vmatprep.subr.mxu0 0.0
    %360 = vmatpush1.msra.mxu0 %v329
    %361 = vmatprep.subr.mxu0 0.0
    %362 = vmatpush1.msra.mxu0 %v330
    %363 = vmatprep.subr.mxu0 0.0
    %364 = vmatpush1.msra.mxu0 %v331
    %365 = vmatprep.subr.mxu0 0.0
    %366 = vmatpush1.msra.mxu0 %v332
    %367 = vmatprep.subr.mxu0 0.0
    %368 = vmatpush1.msra.mxu0 %v333
    %369 = vmatprep.subr.mxu0 0.0
    %370 = vmatpush1.msra.mxu0 %v334
    %371 = vmatprep.subr.mxu0 0.0
    %372 = vmatpush1.msra.mxu0 %v335
    %373 = vmatprep.subr.mxu0 0.0
    %374 = vmatpush1.msra.mxu0 %v336
    %375 = vmatprep.subr.mxu0 0.0
    %376 = vmatpush1.msra.mxu0 %v337
    %377 = vmatprep.subr.mxu0 0.0
    %378 = vmatpush1.msra.mxu0 0.0
    %379 = vmatprep.subr.mxu0 0.0
    %380 = vmatpush1.msra.mxu0 0.0
    %381 = vmatprep.subr.mxu0 0.0
    %382 = vmatpush1.msra.mxu0 0.0
    %383 = vmatprep.subr.mxu0 0.0
    %384 = vmatpush1.msra.mxu0 0.0
    %385 = vmatprep.subr.mxu0 0.0
    %386 = vmatpush1.msra.mxu0 0.0
    %387 = vmatprep.subr.mxu0 0.0
    %388 = vmatpush1.msra.mxu0 0.0
    %389 = vmatprep.subr.mxu0 0.0
    %390 = vmatpush1.msra.mxu0 0.0
    %391 = vmatprep.subr.mxu0 0.0
    %392 = vmatpush1.msra.mxu0 0.0
    %393 = vmatprep.subr.mxu0 0.0
    %394 = vmatpush1.msra.mxu0 0.0
    %395 = vmatprep.subr.mxu0 0.0
    %396 = vmatpush1.msra.mxu0 0.0
    %397 = vmatprep.subr.mxu0 0.0
    %398 = vmatpush1.msra.mxu0 0.0
    %399 = vmatprep.subr.mxu0 0.0
    %400 = vmatpush1.msra.mxu0 0.0
    %401 = vmatprep.subr.mxu0 0.0
    %402 = vmatpush1.msra.mxu0 0.0
    %403 = vmatprep.subr.mxu0 0.0
    %404 = vmatpush1.msra.mxu0 0.0
    %405 = vmatprep.subr.mxu0 0.0
    %406 = vmatpush1.msra.mxu0 0.0
    %407 = vmatprep.subr.mxu0 0.0
    %408 = vmatpush1.msra.mxu0 0.0
    %409 = vmatprep.mubr.f32.mxu0 0.0
    %410 = vmatmul.mubr.f32.gmra.mrb[0].mxu0 %v321
    %v411 = vpop.f32.mrb[0].mxu0
    %v412 = vadd.f32 %v343, %v411
    %v413 = vpop.f32.mrb[0].mxu0
    %414 = vdwg.mxu0
    %v415 = vmax.f32 %v412, 0.0
    %416 = vst [vmem:[#allocation10] sm:$0xff] %v415
    // Predicated region
    $region46: #{tpu_custom_call.1} parent=1 // pred_check
      _
    $region47: #{tpu_custom_call.1} parent=1 // pred_check_branch
      %418 = sbr.rel (0) target = $region49
    $region48: #{tpu_custom_call.1} parent=1 // pred_region
      %s420 = ssub.s32 128, 128
      %421 = vsyncadd [#allocation4], %s420
      %s423 = sshll.u32 [#allocation10], 4
      %s424 = int_to_ptr.vmem [resolvable:$true] %s423
      %426 = dma.vmem_to_hbm [thread:$0]  %s424, 128, %s7, [#allocation4]
    $region49: #{tpu_custom_call.1} parent=1 // pred_fallthru
      _
    // Predicated region
    $region50: #{tpu_custom_call.1} parent=1 // pred_check
      _
    $region51: #{tpu_custom_call.1} parent=1 // pred_check_branch
      %428 = sbr.rel (0) target = $region53
    $region52: #{tpu_custom_call.1} parent=1 // pred_region
      %429 = dma.done [#allocation4], 128
    $region53: #{tpu_custom_call.1} parent=1 // pred_fallthru
      _
    %430 = vsyncpa [#allocation3], 1
    %431 = vsyncpa [#allocation6], 1
    %432 = vsyncpa [#allocation9], 1
    %433 = vsyncpa [#allocation4], 1

</llo_original>
